<compile_context>
chip_gen: v7x
topology: tpu7x:2x2x1
jax: 0.10.0
libtpu: 0.0.40
codegen_flags: <defaults>
</compile_context>

<pallas_src>
import numpy as np
import jax
import jax.numpy as jnp
from jax.experimental import pallas as pl
from jax.experimental.pallas import tpu as pltpu


# ---------------- configuration (matches FastKANLayer defaults) ----------------
GRID_MIN = -2.0
GRID_MAX = 2.0
NUM_GRIDS = 8
LN_EPS = 1e-5
DENOM = (GRID_MAX - GRID_MIN) / (NUM_GRIDS - 1)
GRID_VALS = np.linspace(GRID_MIN, GRID_MAX, NUM_GRIDS).astype(np.float32)  # non-trainable
# |u| clamp chosen so exp(-(u - c_mid)^2) never underflows in f32 (no FTZ-to-zero of the
# recurrence anchor): (8.6 + 0.5)^2 = 82.8 < 87.3. For |u| > 8.6 the true nearest basis
# value is <= exp(-26) ~ 5e-12, so the clamp's absolute error is negligible.
_U_CLAMP = 8.6


def _round_up(x: int, m: int) -> int:
    return ((x + m - 1) // m) * m


# ---------------------------------- kernel ----------------------------------
def _make_kernel(D: int, Dp: int, use_exp_recurrence: bool):
    G = NUM_GRIDS
    c = GRID_VALS.astype(np.float64) / DENOM          # normalized grid centers
    inv_denom = np.float32(1.0 / DENOM)

    def kernel(x_ref, gamma_ref, beta_ref, w_ref, bias_ref, o_ref, basis_ref, acc_ref):
        j = pl.program_id(1)          # output tile
        k = pl.program_id(2)          # K (contraction) chunk
        nk = pl.num_programs(2)

        # ---- build LN -> RBF basis -> SiLU once per batch tile, cache in VMEM ----
        @pl.when((j == 0) & (k == 0))
        def _build_basis():
            x = x_ref[...].astype(jnp.float32)                        # (tb, D)

            # LayerNorm over last dim (biased variance, like torch.nn.LayerNorm), f32
            mean = jnp.mean(x, axis=-1, keepdims=True)
            xc = x - mean
            var = jnp.mean(xc * xc, axis=-1, keepdims=True)
            xn = xc * jax.lax.rsqrt(var + LN_EPS)
            xn = xn * gamma_ref[...] + beta_ref[...]                  # (tb, D)

            if Dp != D:
                # zero the pad columns once (matching weight rows are zero anyway,
                # but stale VMEM could hold NaNs and NaN*0 = NaN).
                basis_ref[...] = jnp.zeros_like(basis_ref)

            dt = basis_ref.dtype

            def put(seg, val):
                # segment starts are multiples of Dp (multiple of 128) -> lane-aligned.
                basis_ref[:, seg * Dp:seg * Dp + D] = val.astype(dt)

            if use_exp_recurrence:
                # b_g = exp(-(u - c_g)^2); chain from the middle grid point:
                #   b_{g+1} = b_g * exp(2u) * exp(c_g^2 - c_{g+1}^2)
                # 3 EUP exps/element instead of G; multiplies land in spare VALU slots.
                u = jnp.clip(xn * inv_denom, -_U_CLAMP, _U_CLAMP)
                r_up = jnp.exp(2.0 * u)
                r_dn = jnp.exp(-2.0 * u)
                m = G // 2
                b_mid = jnp.exp(-jnp.square(u - np.float32(c[m])))    # never underflows
                put(m, b_mid)
                b = b_mid                                             # f32 carry
                for g in range(m, G - 1):
                    b = b * r_up * np.float32(np.exp(c[g] ** 2 - c[g + 1] ** 2))
                    put(g + 1, b)
                b = b_mid
                for g in range(m, 0, -1):
                    b = b * r_dn * np.float32(np.exp(c[g] ** 2 - c[g - 1] ** 2))
                    put(g - 1, b)
            else:
                for g in range(G):
                    put(g, jnp.exp(-jnp.square((xn - np.float32(GRID_VALS[g])) * inv_denom)))

            # (G+1)-th segment: SiLU(x) -- fuses the base linear into the same matmul.
            put(G, x * jax.nn.sigmoid(x))

        # ---- accumulate one K chunk of the fused (spline + base) matmul ----
        @pl.when(k == 0)
        def _init_acc():
            acc_ref[...] = jnp.zeros_like(acc_ref)

        kc = w_ref.shape[0]
        start = pl.multiple_of(k * kc, 128)
        acc_ref[...] += jnp.dot(basis_ref[:, pl.ds(start, kc)], w_ref[...],
                                preferred_element_type=jnp.float32)

        @pl.when(k == nk - 1)
        def _finalize():
            o_ref[...] = (acc_ref[...] + bias_ref[...]).astype(o_ref.dtype)

    return kernel


# ------------------------------ tile selection -------------------------------
def _vmem_capacity_bytes() -> int:
    try:
        cap = int(pltpu.get_tpu_info().vmem_capacity_bytes)
        if cap > 0:
            return cap
    except Exception:
        pass
    return 64 * 2 ** 20   # conservative fallback (v7x); v5e/v6e actually have 128 MiB


def _vmem_estimate(tb, to, nk, D, Dp, Kp, xbytes, wbytes):
    kc = Kp // nk
    return (2 * tb * D * xbytes          # x tile (double-buffered)
            + 4 * D * 4                  # gamma + beta
            + 2 * kc * to * wbytes       # fused weight tile (double-buffered, streams)
            + 2 * to * 4                 # bias tile
            + 2 * tb * to * xbytes       # output tile
            + tb * Kp * wbytes           # persistent basis scratch
            + tb * to * 4                # f32 accumulator scratch
            + 8 * tb * D * 4)            # live f32 temporaries during the basis build


def _choose_tiles(B, D, Op, Dp, Kp, xbytes, wbytes, budget, tb_req, to_req):
    # small D -> bigger batch tile (each step's matmul is tiny vs per-step overhead)
    if tb_req is None:
        tb_req = 256 if D <= 256 else 128
    tb_max = max(8, min(_round_up(tb_req, 8), _round_up(B, 8)))
    tb_cands, t = [], tb_max
    while True:
        tb_cands.append(t)
        if t <= 8:
            break
        t = max(8, ((t // 2) + 7) // 8 * 8)

    m = Op // 128
    to_cands = [128 * d for d in range(m, 0, -1) if m % d == 0]   # lane-dense divisors
    if to_req is not None:
        filt = [v for v in to_cands if v <= max(128, _round_up(to_req, 128))]
        if filt:
            to_cands = filt

    for tb in tb_cands:                     # prefer big batch tiles
        for to in to_cands:                 # then big output tiles
            for nk in (1, 3, 9):            # then the fewest K chunks
                if _vmem_estimate(tb, to, nk, D, Dp, Kp, xbytes, wbytes) <= budget:
                    return tb, to, nk
    return tb_cands[-1], to_cands[-1], 9    # best effort


# -------------------------- parameter prep (hoisted) --------------------------
def fastkan_prepare_params(ln_gamma, ln_beta, spline_w, base_w, base_b, *,
                           mxu_dtype=jnp.bfloat16):
    """One-time re-layout of the FastKANLayer parameters for the fused kernel.

    spline_w: (O, D*G) PyTorch layout  ->  rows [g*Dp + d] of the fused weight
    base_w:   (O, D)                   ->  rows [G*Dp + d]  (silu(x) segment)
    """
    G = NUM_GRIDS
    O, DG = spline_w.shape
    D = base_w.shape[1]
    assert DG == D * G and base_w.shape == (O, D) and base_b.shape == (O,)
    assert ln_gamma.shape == (D,) and ln_beta.shape == (D,)

    Dp = _round_up(D, 128)
    Op = _round_up(O, 128)

    # spline_w[o, d*G + g] -> wsp[g, d, o]   (g-major contraction axis)
    wsp = jnp.transpose(spline_w.reshape(O, D, G), (2, 1, 0))         # (G, D, O)
    wb = jnp.transpose(base_w)[None, :, :]                            # (1, D, O)
    w = jnp.concatenate([wsp, wb], axis=0)                            # (G+1, D, O)
    w = jnp.pad(w, ((0, 0), (0, Dp - D), (0, Op - O)))                # zero pad rows/cols
    w = w.reshape((G + 1) * Dp, Op).astype(mxu_dtype)                 # ((G+1)*Dp, Op)

    bias = jnp.pad(base_b, (0, Op - O)).reshape(1, Op).astype(jnp.float32)
    return dict(
        w=w, bias=bias,
        gamma=ln_gamma.reshape(1, D).astype(jnp.float32),
        beta=ln_beta.reshape(1, D).astype(jnp.float32),
        D=D, Dp=Dp, O=O, Op=Op, mxu_dtype=mxu_dtype,
    )


# ---------------------------------- forward -----------------------------------
def fastkan_layer(x, params, *, tb=None, to=None, use_exp_recurrence=True):
    """x: (B, D)  ->  (B, O), matching FastKANLayer.forward (time_benchmark=False)."""
    B, D = x.shape
    assert D == params["D"], "input_dim mismatch with prepared params"
    Dp, O, Op = params["Dp"], params["O"], params["Op"]
    mxu_dtype = params["mxu_dtype"]
    G = NUM_GRIDS
    Kp = (G + 1) * Dp

    xbytes = jnp.dtype(x.dtype).itemsize
    wbytes = jnp.dtype(mxu_dtype).itemsize

    vmem_cap = _vmem_capacity_bytes()
    budget = int(0.80 * vmem_cap)
    tb, to, nk = _choose_tiles(B, D, Op, Dp, Kp, xbytes, wbytes, budget, tb, to)
    kc = Kp // nk

    Bp = _round_up(B, tb)
    xp = x if Bp == B else jnp.pad(x, ((0, Bp - B), (0, 0)))

    est = _vmem_estimate(tb, to, nk, D, Dp, Kp, xbytes, wbytes)
    vmem_limit = int(min(int(0.90 * vmem_cap), max(32 * 2 ** 20, 2 * est)))

    kernel = _make_kernel(D, Dp, use_exp_recurrence)

    out = pl.pallas_call(
        kernel,
        out_shape=jax.ShapeDtypeStruct((Bp, Op), x.dtype),
        grid_spec=pltpu.PrefetchScalarGridSpec(
            num_scalar_prefetch=0,
            # batch first ("parallel", megacore-shardable on v7x); out / K-chunk axes are
            # "arbitrary" because the basis scratch and the accumulator carry across them.
            grid=(Bp // tb, Op // to, nk),
            in_specs=[
                pl.BlockSpec((tb, D), lambda i, j, k: (i, 0)),    # x tile
                pl.BlockSpec((1, D), lambda i, j, k: (0, 0)),     # LN gamma
                pl.BlockSpec((1, D), lambda i, j, k: (0, 0)),     # LN beta
                pl.BlockSpec((kc, to), lambda i, j, k: (k, j)),   # fused weight chunk
                pl.BlockSpec((1, to), lambda i, j, k: (0, j)),    # base bias tile
            ],
            out_specs=pl.BlockSpec((tb, to), lambda i, j, k: (i, j)),
            scratch_shapes=[
                pltpu.VMEM((tb, Kp), mxu_dtype),                  # cached basis + silu(x)
                pltpu.VMEM((tb, to), jnp.float32),                # f32 accumulator
            ],
        ),
        compiler_params=pltpu.CompilerParams(
            dimension_semantics=("parallel", "arbitrary", "arbitrary"),
            vmem_limit_bytes=vmem_limit,
        ),
    )(xp, params["gamma"], params["beta"], params["w"], params["bias"])

    return out[:B, :O]


# --------------------------------- reference ----------------------------------
def fastkan_reference(x, ln_gamma, ln_beta, spline_w, base_w, base_b):
    """Pure-JAX f32 reference mirroring the PyTorch forward."""
    xf = x.astype(jnp.float32)
    mean = jnp.mean(xf, axis=-1, keepdims=True)
    var = jnp.mean((xf - mean) ** 2, axis=-1, keepdims=True)
    xn = (xf - mean) / jnp.sqrt(var + LN_EPS) * ln_gamma + ln_beta
    grid = jnp.asarray(GRID_VALS)
    basis = jnp.exp(-(((xn[..., None] - grid) / DENOM) ** 2))        # (B, D, G)
    flat = basis.reshape(basis.shape[0], -1)                         # (B, D*G)
    ret = flat @ spline_w.T
    base = (xf * jax.nn.sigmoid(xf)) @ base_w.T + base_b
    return (ret + base).astype(x.dtype)


if __name__ == "__main__":
    # Small, deterministic example consistent with the module's forward.
    B, D, O = 8, 32, 16   # batch, input_dim, output_dim

    key = jax.random.PRNGKey(0)
    k_x, k_sw, k_bw, k_bb = jax.random.split(key, 4)

    x = jax.random.normal(k_x, (B, D), dtype=jnp.float32)
    ln_gamma = jnp.ones((D,), jnp.float32)                           # LayerNorm weight
    ln_beta = jnp.zeros((D,), jnp.float32)                           # LayerNorm bias
    # SplineLinear: trunc_normal(std=0.1) approximated with a clipped normal
    spline_w = jnp.clip(0.1 * jax.random.normal(k_sw, (O, D * NUM_GRIDS)), -0.2, 0.2)
    bound = 1.0 / np.sqrt(D)
    base_w = jax.random.uniform(k_bw, (O, D), minval=-bound, maxval=bound)
    base_b = jax.random.uniform(k_bb, (O,), minval=-bound, maxval=bound)

    ref = fastkan_reference(x, ln_gamma, ln_beta, spline_w, base_w, base_b)

    # Parameter re-layout is done ONCE and reused across calls (hoisted out of forward).
    params_f32 = fastkan_prepare_params(ln_gamma, ln_beta, spline_w, base_w, base_b,
                                        mxu_dtype=jnp.float32)
    params_bf16 = fastkan_prepare_params(ln_gamma, ln_beta, spline_w, base_w, base_b,
                                         mxu_dtype=jnp.bfloat16)

    # 1) exact-math check: f32 MXU operands, tight tolerance
    out_f32 = jax.block_until_ready(fastkan_layer(x, params_f32))
    np.testing.assert_allclose(np.asarray(out_f32), np.asarray(ref), rtol=5e-3, atol=5e-3)

    # 2) default fast path: bf16 MXU operands (looser tolerance for bf16 rounding)
    out = jax.block_until_ready(fastkan_layer(x, params_bf16))
    np.testing.assert_allclose(np.asarray(out), np.asarray(ref), rtol=5e-2, atol=5e-2)

    # 3) non-multiple batch exercises the wrapper-side batch padding path
    out_ragged = jax.block_until_ready(fastkan_layer(x[:6], params_bf16))
    np.testing.assert_allclose(np.asarray(out_ragged), np.asarray(ref)[:6],
                               rtol=5e-2, atol=5e-2)

    print("KERNEL_OK")
</pallas_src>

<mosaic_0001>
module attributes {stable_mosaic.version = 11 : i64} {
  func.func @kernel(%arg0: i32, %arg1: i32, %arg2: i32, %arg3: memref<8x32xf32, #tpu.memory_space<vmem>>, %arg4: memref<1x32xf32, #tpu.memory_space<vmem>>, %arg5: memref<1x32xf32, #tpu.memory_space<vmem>>, %arg6: memref<1152x128xf32, #tpu.memory_space<vmem>>, %arg7: memref<1x128xf32, #tpu.memory_space<vmem>>, %arg8: memref<8x128xf32, #tpu.memory_space<vmem>>, %arg9: memref<8x1152xf32, #tpu.memory_space<vmem>>, %arg10: memref<8x128xf32, #tpu.memory_space<vmem>>) attributes {dimension_semantics = [#tpu.dimension_semantics<parallel>, #tpu.dimension_semantics<arbitrary>, #tpu.dimension_semantics<arbitrary>], iteration_bounds = array<i64: 1, 1, 1>, scalar_prefetch = 0 : i64, scratch_operands = 2 : i64, tpu.core_type = #tpu.core_type<tc>, window_params = [{transform_indices = @transform_0, window_bounds = array<i64: 8, 32>}, {pipeline_mode = #tpu.pipeline_mode<synchronous>, transform_indices = @transform_1, window_bounds = array<i64: 1, 32>}, {pipeline_mode = #tpu.pipeline_mode<synchronous>, transform_indices = @transform_2, window_bounds = array<i64: 1, 32>}, {transform_indices = @transform_3, window_bounds = array<i64: 1152, 128>}, {transform_indices = @transform_4, window_bounds = array<i64: 1, 128>}, {transform_indices = @transform_5, window_bounds = array<i64: 8, 128>}]} {
    %c0_i32 = arith.constant 0 : i32
    %0 = arith.cmpi eq, %arg1, %c0_i32 : i32
    %c0_i32_0 = arith.constant 0 : i32
    %1 = arith.cmpi eq, %arg2, %c0_i32_0 : i32
    %2 = arith.andi %0, %1 : i1
    %3 = arith.extui %2 : i1 to i32
    %c0_i32_1 = arith.constant 0 : i32
    %4 = arith.cmpi ne, %3, %c0_i32_1 : i32
    scf.if %4 {
      %c0_12 = arith.constant 0 : index
      %c0_13 = arith.constant 0 : index
      %20 = vector.load %arg3[%c0_12, %c0_13] : memref<8x32xf32, #tpu.memory_space<vmem>>, vector<8x32xf32>
      %cst_14 = arith.constant dense<0.000000e+00> : vector<8xf32>
      %21 = vector.multi_reduction <add>, %20, %cst_14 [1] : vector<8x32xf32> to vector<8xf32>
      %22 = vector.shape_cast %21 : vector<8xf32> to vector<8x1xf32>
      %cst_15 = arith.constant 3.200000e+01 : f32
      %23 = vector.broadcast %cst_15 : f32 to vector<8x1xf32>
      %24 = arith.divf %22, %23 : vector<8x1xf32>
      %25 = vector.broadcast %24 : vector<8x1xf32> to vector<8x32xf32>
      %26 = arith.subf %20, %25 : vector<8x32xf32>
      %27 = arith.mulf %26, %26 : vector<8x32xf32>
      %cst_16 = arith.constant dense<0.000000e+00> : vector<8xf32>
      %28 = vector.multi_reduction <add>, %27, %cst_16 [1] : vector<8x32xf32> to vector<8xf32>
      %29 = vector.shape_cast %28 : vector<8xf32> to vector<8x1xf32>
      %cst_17 = arith.constant 3.200000e+01 : f32
      %30 = vector.broadcast %cst_17 : f32 to vector<8x1xf32>
      %31 = arith.divf %29, %30 : vector<8x1xf32>
      %cst_18 = arith.constant 9.99999974E-6 : f32
      %32 = vector.broadcast %cst_18 : f32 to vector<8x1xf32>
      %33 = arith.addf %31, %32 : vector<8x1xf32>
      %34 = math.rsqrt %33 : vector<8x1xf32>
      %35 = vector.broadcast %34 : vector<8x1xf32> to vector<8x32xf32>
      %36 = arith.mulf %26, %35 : vector<8x32xf32>
      %c0_19 = arith.constant 0 : index
      %c0_20 = arith.constant 0 : index
      %37 = vector.load %arg4[%c0_19, %c0_20] : memref<1x32xf32, #tpu.memory_space<vmem>>, vector<1x32xf32>
      %38 = vector.broadcast %37 : vector<1x32xf32> to vector<8x32xf32>
      %39 = arith.mulf %36, %38 : vector<8x32xf32>
      %c0_21 = arith.constant 0 : index
      %c0_22 = arith.constant 0 : index
      %40 = vector.load %arg5[%c0_21, %c0_22] : memref<1x32xf32, #tpu.memory_space<vmem>>, vector<1x32xf32>
      %41 = vector.broadcast %40 : vector<1x32xf32> to vector<8x32xf32>
      %42 = arith.addf %39, %41 : vector<8x32xf32>
      %cst_23 = arith.constant 0.000000e+00 : f32
      %43 = vector.broadcast %cst_23 : f32 to vector<8x1152xf32>
      %c0_24 = arith.constant 0 : index
      %c0_25 = arith.constant 0 : index
      %44 = vector.load %arg9[%c0_24, %c0_25] : memref<8x1152xf32, #tpu.memory_space<vmem>>, vector<8x1152xf32>
      tpu.vector_store %arg9[%c0_24, %c0_25], %43 {strides = array<i32>} : memref<8x1152xf32, #tpu.memory_space<vmem>>, vector<8x1152xf32>,
      %cst_26 = arith.constant 1.750000e+00 : f32
      %45 = vector.broadcast %cst_26 : f32 to vector<8x32xf32>
      %46 = arith.mulf %42, %45 : vector<8x32xf32>
      %cst_27 = arith.constant -8.600000e+00 : f32
      %cst_28 = arith.constant 8.600000e+00 : f32
      %47 = vector.broadcast %cst_27 : f32 to vector<8x32xf32>
      %48 = arith.maximumf %47, %46 : vector<8x32xf32>
      %49 = vector.broadcast %cst_28 : f32 to vector<8x32xf32>
      %50 = arith.minimumf %49, %48 : vector<8x32xf32>
      %cst_29 = arith.constant 2.000000e+00 : f32
      %51 = vector.broadcast %cst_29 : f32 to vector<8x32xf32>
      %52 = arith.mulf %51, %50 : vector<8x32xf32>
      %53 = math.exp %52 : vector<8x32xf32>
      %cst_30 = arith.constant -2.000000e+00 : f32
      %54 = vector.broadcast %cst_30 : f32 to vector<8x32xf32>
      %55 = arith.mulf %54, %50 : vector<8x32xf32>
      %56 = math.exp %55 : vector<8x32xf32>
      %cst_31 = arith.constant 5.000000e-01 : f32
      %57 = vector.broadcast %cst_31 : f32 to vector<8x32xf32>
      %58 = arith.subf %50, %57 : vector<8x32xf32>
      %59 = arith.mulf %58, %58 : vector<8x32xf32>
      %cst_32 = arith.constant 0.000000e+00 : f32
      %60 = vector.broadcast %cst_32 : f32 to vector<8x32xf32>
      %61 = arith.subf %60, %59 : vector<8x32xf32>
      %62 = math.exp %61 : vector<8x32xf32>
      %c0_33 = arith.constant 0 : index
      %c512 = arith.constant 512 : index
      %63 = vector.load %arg9[%c0_33, %c512] : memref<8x1152xf32, #tpu.memory_space<vmem>>, vector<8x32xf32>
      tpu.vector_store %arg9[%c0_33, %c512], %62 {strides = array<i32>} : memref<8x1152xf32, #tpu.memory_space<vmem>>, vector<8x32xf32>,
      %64 = arith.mulf %62, %53 : vector<8x32xf32>
      %cst_34 = arith.constant 0.135335281 : f32
      %65 = vector.broadcast %cst_34 : f32 to vector<8x32xf32>
      %66 = arith.mulf %64, %65 : vector<8x32xf32>
      %c0_35 = arith.constant 0 : index
      %c640 = arith.constant 640 : index
      %67 = vector.load %arg9[%c0_35, %c640] : memref<8x1152xf32, #tpu.memory_space<vmem>>, vector<8x32xf32>
      tpu.vector_store %arg9[%c0_35, %c640], %66 {strides = array<i32>} : memref<8x1152xf32, #tpu.memory_space<vmem>>, vector<8x32xf32>,
      %68 = arith.mulf %66, %53 : vector<8x32xf32>
      %cst_36 = arith.constant 0.0183156338 : f32
      %69 = vector.broadcast %cst_36 : f32 to vector<8x32xf32>
      %70 = arith.mulf %68, %69 : vector<8x32xf32>
      %c0_37 = arith.constant 0 : index
      %c768 = arith.constant 768 : index
      %71 = vector.load %arg9[%c0_37, %c768] : memref<8x1152xf32, #tpu.memory_space<vmem>>, vector<8x32xf32>
      tpu.vector_store %arg9[%c0_37, %c768], %70 {strides = array<i32>} : memref<8x1152xf32, #tpu.memory_space<vmem>>, vector<8x32xf32>,
      %72 = arith.mulf %70, %53 : vector<8x32xf32>
      %cst_38 = arith.constant 0.00247875298 : f32
      %73 = vector.broadcast %cst_38 : f32 to vector<8x32xf32>
      %74 = arith.mulf %72, %73 : vector<8x32xf32>
      %c0_39 = arith.constant 0 : index
      %c896 = arith.constant 896 : index
      %75 = vector.load %arg9[%c0_39, %c896] : memref<8x1152xf32, #tpu.memory_space<vmem>>, vector<8x32xf32>
      tpu.vector_store %arg9[%c0_39, %c896], %74 {strides = array<i32>} : memref<8x1152xf32, #tpu.memory_space<vmem>>, vector<8x32xf32>,
      %76 = arith.mulf %62, %56 : vector<8x32xf32>
      %cst_40 = arith.constant 1.000000e+00 : f32
      %77 = vector.broadcast %cst_40 : f32 to vector<8x32xf32>
      %78 = arith.mulf %76, %77 : vector<8x32xf32>
      %c0_41 = arith.constant 0 : index
      %c384 = arith.constant 384 : index
      %79 = vector.load %arg9[%c0_41, %c384] : memref<8x1152xf32, #tpu.memory_space<vmem>>, vector<8x32xf32>
      tpu.vector_store %arg9[%c0_41, %c384], %78 {strides = array<i32>} : memref<8x1152xf32, #tpu.memory_space<vmem>>, vector<8x32xf32>,
      %80 = arith.mulf %78, %56 : vector<8x32xf32>
      %cst_42 = arith.constant 0.135335281 : f32
      %81 = vector.broadcast %cst_42 : f32 to vector<8x32xf32>
      %82 = arith.mulf %80, %81 : vector<8x32xf32>
      %c0_43 = arith.constant 0 : index
      %c256 = arith.constant 256 : index
      %83 = vector.load %arg9[%c0_43, %c256] : memref<8x1152xf32, #tpu.memory_space<vmem>>, vector<8x32xf32>
      tpu.vector_store %arg9[%c0_43, %c256], %82 {strides = array<i32>} : memref<8x1152xf32, #tpu.memory_space<vmem>>, vector<8x32xf32>,
      %84 = arith.mulf %82, %56 : vector<8x32xf32>
      %cst_44 = arith.constant 0.0183156338 : f32
      %85 = vector.broadcast %cst_44 : f32 to vector<8x32xf32>
      %86 = arith.mulf %84, %85 : vector<8x32xf32>
      %c0_45 = arith.constant 0 : index
      %c128 = arith.constant 128 : index
      %87 = vector.load %arg9[%c0_45, %c128] : memref<8x1152xf32, #tpu.memory_space<vmem>>, vector<8x32xf32>
      tpu.vector_store %arg9[%c0_45, %c128], %86 {strides = array<i32>} : memref<8x1152xf32, #tpu.memory_space<vmem>>, vector<8x32xf32>,
      %88 = arith.mulf %86, %56 : vector<8x32xf32>
      %cst_46 = arith.constant 0.00247875298 : f32
      %89 = vector.broadcast %cst_46 : f32 to vector<8x32xf32>
      %90 = arith.mulf %88, %89 : vector<8x32xf32>
      %c0_47 = arith.constant 0 : index
      %c0_48 = arith.constant 0 : index
      %91 = vector.load %arg9[%c0_47, %c0_48] : memref<8x1152xf32, #tpu.memory_space<vmem>>, vector<8x32xf32>
      tpu.vector_store %arg9[%c0_47, %c0_48], %90 {strides = array<i32>} : memref<8x1152xf32, #tpu.memory_space<vmem>>, vector<8x32xf32>,
      %92 = arith.negf %20 : vector<8x32xf32>
      %93 = math.exp %92 : vector<8x32xf32>
      %cst_49 = arith.constant 1.000000e+00 : f32
      %94 = vector.broadcast %cst_49 : f32 to vector<8x32xf32>
      %95 = arith.addf %94, %93 : vector<8x32xf32>
      %96 = arith.divf %94, %95 : vector<8x32xf32>
      %97 = arith.mulf %20, %96 : vector<8x32xf32>
      %c0_50 = arith.constant 0 : index
      %c1024 = arith.constant 1024 : index
      %98 = vector.load %arg9[%c0_50, %c1024] : memref<8x1152xf32, #tpu.memory_space<vmem>>, vector<8x32xf32>
      tpu.vector_store %arg9[%c0_50, %c1024], %97 {strides = array<i32>} : memref<8x1152xf32, #tpu.memory_space<vmem>>, vector<8x32xf32>,
    } else {
    }
    %c0_i32_2 = arith.constant 0 : i32
    %5 = arith.cmpi eq, %arg2, %c0_i32_2 : i32
    %6 = arith.extui %5 : i1 to i32
    %c0_i32_3 = arith.constant 0 : i32
    %7 = arith.cmpi ne, %6, %c0_i32_3 : i32
    scf.if %7 {
      %cst_12 = arith.constant 0.000000e+00 : f32
      %20 = vector.broadcast %cst_12 : f32 to vector<8x128xf32>
      %c0_13 = arith.constant 0 : index
      %c0_14 = arith.constant 0 : index
      %21 = vector.load %arg10[%c0_13, %c0_14] : memref<8x128xf32, #tpu.memory_space<vmem>>, vector<8x128xf32>
      tpu.vector_store %arg10[%c0_13, %c0_14], %20 {strides = array<i32>} : memref<8x128xf32, #tpu.memory_space<vmem>>, vector<8x128xf32>,
    } else {
    }
    %c1152_i32 = arith.constant 1152 : i32
    %8 = arith.muli %arg2, %c1152_i32 : i32
    %9 = tpu.assume_multiple %8, 128 : i32
    %c0 = arith.constant 0 : index
    %c0_4 = arith.constant 0 : index
    %10 = vector.load %arg10[%c0, %c0_4] : memref<8x128xf32, #tpu.memory_space<vmem>>, vector<8x128xf32>
    %c0_5 = arith.constant 0 : index
    %11 = arith.index_cast %9 : i32 to index
    %12 = vector.load %arg9[%c0_5, %11] : memref<8x1152xf32, #tpu.memory_space<vmem>>, vector<8x1152xf32>
    %c0_6 = arith.constant 0 : index
    %c0_7 = arith.constant 0 : index
    %13 = vector.load %arg6[%c0_6, %c0_7] : memref<1152x128xf32, #tpu.memory_space<vmem>>, vector<1152x128xf32>
    %cst = arith.constant dense<0.000000e+00> : vector<8x128xf32>
    %14 = tpu.matmul %12, %13, %cst {dimension_numbers = #tpu.dot_dimension_numbers<[1], [0], [0], [1], [0, 0, 1, 1], [], []>} : vector<8x1152xf32>, vector<1152x128xf32>, vector<8x128xf32> -> vector<8x128xf32>
    %15 = arith.addf %10, %14 : vector<8x128xf32>
    %c0_8 = arith.constant 0 : index
    %c0_9 = arith.constant 0 : index
    %16 = vector.load %arg10[%c0_8, %c0_9] : memref<8x128xf32, #tpu.memory_space<vmem>>, vector<8x128xf32>
    tpu.vector_store %arg10[%c0_8, %c0_9], %15 {strides = array<i32>} : memref<8x128xf32, #tpu.memory_space<vmem>>, vector<8x128xf32>,
    %c0_i32_10 = arith.constant 0 : i32
    %17 = arith.cmpi eq, %arg2, %c0_i32_10 : i32
    %18 = arith.extui %17 : i1 to i32
    %c0_i32_11 = arith.constant 0 : i32
    %19 = arith.cmpi ne, %18, %c0_i32_11 : i32
    scf.if %19 {
      %c0_12 = arith.constant 0 : index
      %c0_13 = arith.constant 0 : index
      %20 = vector.load %arg10[%c0_12, %c0_13] : memref<8x128xf32, #tpu.memory_space<vmem>>, vector<8x128xf32>
      %c0_14 = arith.constant 0 : index
      %c0_15 = arith.constant 0 : index
      %21 = vector.load %arg7[%c0_14, %c0_15] : memref<1x128xf32, #tpu.memory_space<vmem>>, vector<1x128xf32>
      %22 = vector.broadcast %21 : vector<1x128xf32> to vector<8x128xf32>
      %23 = arith.addf %20, %22 : vector<8x128xf32>
      %c0_16 = arith.constant 0 : index
      %c0_17 = arith.constant 0 : index
      %24 = vector.load %arg8[%c0_16, %c0_17] : memref<8x128xf32, #tpu.memory_space<vmem>>, vector<8x128xf32>
      tpu.vector_store %arg8[%c0_16, %c0_17], %23 {strides = array<i32>} : memref<8x128xf32, #tpu.memory_space<vmem>>, vector<8x128xf32>,
    } else {
    }
    return
  }
  func.func @transform_0(%arg0: i32, %arg1: i32, %arg2: i32) -> (i32, i32) {
    %c0_i32 = arith.constant 0 : i32
    %c0_i32_0 = arith.constant 0 : i32
    return %arg0, %c0_i32 : i32, i32
  }
  func.func @transform_1(%arg0: i32, %arg1: i32, %arg2: i32) -> (i32, i32) {
    %c0_i32 = arith.constant 0 : i32
    %c0_i32_0 = arith.constant 0 : i32
    %c0_i32_1 = arith.constant 0 : i32
    return %c0_i32, %c0_i32_0 : i32, i32
  }
  func.func @transform_2(%arg0: i32, %arg1: i32, %arg2: i32) -> (i32, i32) {
    %c0_i32 = arith.constant 0 : i32
    %c0_i32_0 = arith.constant 0 : i32
    %c0_i32_1 = arith.constant 0 : i32
    return %c0_i32, %c0_i32_0 : i32, i32
  }
  func.func @transform_3(%arg0: i32, %arg1: i32, %arg2: i32) -> (i32, i32) {
    %c0_i32 = arith.constant 0 : i32
    return %arg2, %arg1 : i32, i32
  }
  func.func @transform_4(%arg0: i32, %arg1: i32, %arg2: i32) -> (i32, i32) {
    %c0_i32 = arith.constant 0 : i32
    %c0_i32_0 = arith.constant 0 : i32
    return %c0_i32, %arg1 : i32, i32
  }
  func.func @transform_5(%arg0: i32, %arg1: i32, %arg2: i32) -> (i32, i32) {
    %c0_i32 = arith.constant 0 : i32
    return %arg0, %arg1 : i32, i32
  }
}

</mosaic_0001>

<llo_original>
// kernel: tpu_custom_call.1
$region0: #{tpu_custom_call.1}
  #allocation0 [shape = 'u32[]', space=smem, size = 0x4, offset = 0x4, fixed_abs, tag = 'smem constant byte address 0x4 - core index']
  #allocation1 [shape = 'u32[144,128]{1,0:T(1,128)}', space=vmem, size = 0x12000, scoped, tag = 'internal scratch']
  #allocation2 [shape = 'f32[8,1152]{1,0:T(8,128)}', space=vmem, size = 0x9000, scoped, tag = 'scratch operand']
  #allocation3 [shape = 'f32[8,128]{1,0:T(8,128)}', space=vmem, size = 0x1000, scoped, tag = 'scratch operand']
  %s0 = inlined_call_operand.hbm [shape: f32[8,32], index: 0, kind: input, shape index: {}]
  %s1 = inlined_call_operand.vmem [shape: f32[1,32], index: 1, kind: input, shape index: {}]
  %s2 = inlined_call_operand.vmem [shape: f32[1,32], index: 2, kind: input, shape index: {}]
  %s3 = inlined_call_operand.hbm [shape: f32[1152,128], index: 3, kind: input, shape index: {}]
  %s4 = inlined_call_operand.vmem [shape: f32[1,128], index: 4, kind: input, shape index: {}]
  %s5 = inlined_call_operand.hbm [shape: f32[8,128], index: 5, kind: output, shape index: {}]
  %s6 = sld [smem:[#allocation0]]
  $region50: #{tpu_custom_call.1} parent=0
    _
  %s8 = ssub.s32 1, %s6
  %s9 = scalar_select 0, %s8, %s6
  $region1: #{tpu_custom_call.1} parent=0
    #allocation4 [shape = 'u8[4096]{0}', space=vmem, size = 0x1000, scoped, tag = 'input window, operand 0, single buffered']
    #allocation5 [shape = 's32[1]{0}', space=sflag, size = 0x4, scoped, tag = 'scoped memory for tpu_custom_call.1']
    #allocation6 [shape = 's32[1]{0}', space=sflag, size = 0x4, scoped, tag = 'scoped memory for tpu_custom_call.1']
    #allocation7 [shape = 'u8[589824]{0}', space=vmem, size = 0x90000, scoped, tag = 'input window, operand 3, single buffered']
    #allocation8 [shape = 's32[1]{0}', space=sflag, size = 0x4, scoped, tag = 'scoped memory for tpu_custom_call.1']
    #allocation9 [shape = 'u8[4096]{0}', space=vmem, size = 0x1000, scoped, tag = 'output window, operand 0, single buffered']
    %10 = vsyncpa [#allocation5], 0
    %11 = vsyncpa [#allocation8], 0
    %12 = vsyncpa [#allocation6], 0
    // Predicated region
    $region2: #{tpu_custom_call.1} parent=1 // pred_check
      _
    $region3: #{tpu_custom_call.1} parent=1 // pred_check_branch
      %14 = sbr.rel (0) target = $region5
    $region4: #{tpu_custom_call.1} parent=1 // pred_region
      %s16 = ssub.s32 128, 128
      %17 = vsyncadd [#allocation5], %s16
      %s19 = sshll.u32 [#allocation4], 4
      %s20 = int_to_ptr.vmem [resolvable:$true] %s19
      %22 = dma.hbm_to_vmem [thread:$0]  %s0, 128, %s20, [#allocation5]
    $region5: #{tpu_custom_call.1} parent=1 // pred_fallthru
      _
    // Predicated region
    $region6: #{tpu_custom_call.1} parent=1 // pred_check
      _
    $region7: #{tpu_custom_call.1} parent=1 // pred_check_branch
      %24 = sbr.rel (0) target = $region9
    $region8: #{tpu_custom_call.1} parent=1 // pred_region
      _
    $region9: #{tpu_custom_call.1} parent=1 // pred_fallthru
      _
    // Predicated region
    $region10: #{tpu_custom_call.1} parent=1 // pred_check
      _
    $region11: #{tpu_custom_call.1} parent=1 // pred_check_branch
      %26 = sbr.rel (0) target = $region13
    $region12: #{tpu_custom_call.1} parent=1 // pred_region
      _
    $region13: #{tpu_custom_call.1} parent=1 // pred_fallthru
      _
    // Predicated region
    $region14: #{tpu_custom_call.1} parent=1 // pred_check
      _
    $region15: #{tpu_custom_call.1} parent=1 // pred_check_branch
      %28 = sbr.rel (0) target = $region17
    $region16: #{tpu_custom_call.1} parent=1 // pred_region
      %s30 = ssub.s32 18432, 18432
      %31 = vsyncadd [#allocation8], %s30
      %s32 = sshll.u32 [#allocation7], 4
      %s33 = int_to_ptr.vmem [resolvable:$true] %s32
      %38 = dma.hbm_to_vmem [thread:$0]  %s3, 18432, %s33, [#allocation8], 128, 128, 8
    $region17: #{tpu_custom_call.1} parent=1 // pred_fallthru
      _
    // Predicated region
    $region18: #{tpu_custom_call.1} parent=1 // pred_check
      _
    $region19: #{tpu_custom_call.1} parent=1 // pred_check_branch
      %40 = sbr.rel (0) target = $region21
    $region20: #{tpu_custom_call.1} parent=1 // pred_region
      _
    $region21: #{tpu_custom_call.1} parent=1 // pred_fallthru
      _
    // Predicated region
    $region22: #{tpu_custom_call.1} parent=1 // pred_check
      _
    $region23: #{tpu_custom_call.1} parent=1 // pred_check_branch
      %42 = sbr.rel (0) target = $region25
    $region24: #{tpu_custom_call.1} parent=1 // pred_region
      %43 = dma.done [#allocation5], 128
    $region25: #{tpu_custom_call.1} parent=1 // pred_fallthru
      _
    // Predicated region
    $region26: #{tpu_custom_call.1} parent=1 // pred_check
      _
    $region27: #{tpu_custom_call.1} parent=1 // pred_check_branch
      %45 = sbr.rel (0) target = $region29
    $region28: #{tpu_custom_call.1} parent=1 // pred_region
      %46 = dma.done [#allocation8], 18432
    $region29: #{tpu_custom_call.1} parent=1 // pred_fallthru
      _
    %p47 = scmp.eq.s32.totalorder 0, 0
    %p48 = scmp.eq.s32.totalorder 0, 0
    %p49 = pnand %p47, %p48
    %p50 = pneg %p49
    // Predicated region
    $region30: #{tpu_custom_call.1} parent=1 // pred_check
      _
    $region31: #{tpu_custom_call.1} parent=1 // pred_check_branch
      %52 = sbr.rel (%p49) target = $region33
    $region32: #{tpu_custom_call.1} parent=1 // pred_region
      %v53 = vld [vmem:[#allocation4] sm:$0xff]
      %vm54 = vcmask 261120
      %v55 = vsel %vm54, %v53, 0.0
      %56 = vadd.xlane.f32.xlu0 %v55
      %v57 = vpop.xlane.xlu0 %56
      %v58 = vrcp.pop 32.0
      %v59 = vmul.f32 %v57, %v58
      %v60 = vsub.f32 %v53, %v59
      %v61 = vmul.f32 %v60, %v60
      %v62 = vsel %vm54, %v61, 0.0
      %63 = vadd.xlane.f32.xlu0 %v62
      %v64 = vpop.xlane.xlu0 %63
      %v65 = vmul.f32 %v64, %v58
      %v66 = vadd.f32 %v65, 1e-05
      %v67 = vrsqrt.pop %v66
      %v68 = vmul.f32 %v60, %v67
      %v69 = vld [vmem:[%s1] sm:$0x1]
      %v71 = vlaneseq
      %v72 = vshrl.u32 %v71, 7
      %v73 = vsub.s32 0, %v72
      %v74 = vrot.slane %v69, %v73
      %v76 = vmul.f32 %v68, %v74
      %v77 = vld [vmem:[%s2] sm:$0x1]
      %v79 = vlaneseq
      %v80 = vshrl.u32 %v79, 7
      %v81 = vsub.s32 0, %v80
      %v82 = vrot.slane %v77, %v81
      %v84 = vadd.f32 %v76, %v82
      %85 = vst [vmem:[#allocation2] sm:$0xff] 0.0
      %86 = vst [vmem:[#allocation2 + $0x8] sm:$0xff] 0.0
      %87 = vst [vmem:[#allocation2 + $0x10] sm:$0xff] 0.0
      %88 = vst [vmem:[#allocation2 + $0x18] sm:$0xff] 0.0
      %89 = vst [vmem:[#allocation2 + $0x20] sm:$0xff] 0.0
      %90 = vst [vmem:[#allocation2 + $0x28] sm:$0xff] 0.0
      %91 = vst [vmem:[#allocation2 + $0x30] sm:$0xff] 0.0
      %92 = vst [vmem:[#allocation2 + $0x38] sm:$0xff] 0.0
      %93 = vst [vmem:[#allocation2 + $0x40] sm:$0xff] 0.0
      %v94 = vmul.f32 %v84, 1.75
      %v95 = vmax.f32 %v94, -8.6
      %v96 = vmin.f32 %v95, 8.6
      %v97 = vmul.f32 %v96, 2.0
      %v98 = vmul.f32 %v97, 1.442695
      %v99 = vpow.pop %v98
      %v100 = vmul.f32 %v96, -2.0
      %v101 = vmul.f32 %v100, 1.442695
      %v102 = vpow.pop %v101
      %v103 = vsub.f32 %v96, 0.5
      %v104 = vmul.f32 %v103, %v103
      %v105 = vsub.f32 0.0, %v104
      %v106 = vmul.f32 %v105, 1.442695
      %v107 = vpow.pop %v106
      %108 = vst.msk [vmem:[#allocation2 + $0x20] sm:$0xff] %vm54, %v107
      %v109 = vmul.f32 %v107, %v99
      %v110 = vmul.f32 %v109, 0.13533528
      %111 = vst.msk [vmem:[#allocation2 + $0x28] sm:$0xff] %vm54, %v110
      %v112 = vmul.f32 %v110, %v99
      %v113 = vmul.f32 %v112, 0.018315634
      %114 = vst.msk [vmem:[#allocation2 + $0x30] sm:$0xff] %vm54, %v113
      %v115 = vmul.f32 %v113, %v99
      %v116 = vmul.f32 %v115, 0.002478753
      %117 = vst.msk [vmem:[#allocation2 + $0x38] sm:$0xff] %vm54, %v116
      %v118 = vmul.f32 %v107, %v102
      %119 = vst.msk [vmem:[#allocation2 + $0x18] sm:$0xff] %vm54, %v118
      %v120 = vmul.f32 %v118, %v102
      %v121 = vmul.f32 %v120, 0.13533528
      %122 = vst.msk [vmem:[#allocation2 + $0x10] sm:$0xff] %vm54, %v121
      %v123 = vmul.f32 %v121, %v102
      %v124 = vmul.f32 %v123, 0.018315634
      %125 = vst.msk [vmem:[#allocation2 + $0x8] sm:$0xff] %vm54, %v124
      %v126 = vmul.f32 %v124, %v102
      %v127 = vmul.f32 %v126, 0.002478753
      %128 = vst.msk [vmem:[#allocation2] sm:$0xff] %vm54, %v127
      %v129 = vxor.u32 %v53, 2147483648
      %v130 = vmul.f32 %v129, 1.442695
      %v131 = vpow.pop %v130
      %v132 = vadd.f32 %v131, 1.0
      %v133 = vrcp.pop %v132
      %v134 = vmul.f32 1.0, %v133
      %v135 = vmul.f32 %v53, %v134
      %136 = vst.msk [vmem:[#allocation2 + $0x40] sm:$0xff] %vm54, %v135
    $region33: #{tpu_custom_call.1} parent=1 // pred_fallthru
      _
    // Predicated region
    $region34: #{tpu_custom_call.1} parent=1 // pred_check
      %p137 = pneg %p48
    $region35: #{tpu_custom_call.1} parent=1 // pred_check_branch
      %139 = sbr.rel (%p137) target = $region37
    $region36: #{tpu_custom_call.1} parent=1 // pred_region
      %140 = vst [vmem:[#allocation3] sm:$0xff] 0.0
    $region37: #{tpu_custom_call.1} parent=1 // pred_fallthru
      _
    %s141 = smul.u32 0, 1152
    %v142 = vld [vmem:[#allocation3] sm:$0xff]
    %s143 = sshra.s32 %s141, 7
    %s144 = sand.u32 %s141, 127
    %s145 = smul.addr %s143, 8
    %s146 = scalar_lea.vmem [#allocation2], %s145
    %v147 = vld [vmem:[%s146] sm:$0xff]
    %v148 = vld [vmem:[%s146 + $0x8] sm:$0xff]
    %v149 = vld [vmem:[%s146 + $0x10] sm:$0xff]
    %v150 = vld [vmem:[%s146 + $0x18] sm:$0xff]
    %v151 = vld [vmem:[%s146 + $0x20] sm:$0xff]
    %v152 = vld [vmem:[%s146 + $0x28] sm:$0xff]
    %v153 = vld [vmem:[%s146 + $0x30] sm:$0xff]
    %v154 = vld [vmem:[%s146 + $0x38] sm:$0xff]
    %v155 = vld [vmem:[%s146 + $0x40] sm:$0xff]
    %v156 = vld [vmem:[#allocation7] sm:$0xff]
    %v157 = vld [vmem:[#allocation7 + $0x8] sm:$0xff]
    %v158 = vld [vmem:[#allocation7 + $0x10] sm:$0xff]
    %v159 = vld [vmem:[#allocation7 + $0x18] sm:$0xff]
    %v160 = vld [vmem:[#allocation7 + $0x20] sm:$0xff]
    %v161 = vld [vmem:[#allocation7 + $0x28] sm:$0xff]
    %v162 = vld [vmem:[#allocation7 + $0x30] sm:$0xff]
    %v163 = vld [vmem:[#allocation7 + $0x38] sm:$0xff]
    %v164 = vld [vmem:[#allocation7 + $0x40] sm:$0xff]
    %v165 = vld [vmem:[#allocation7 + $0x48] sm:$0xff]
    %v166 = vld [vmem:[#allocation7 + $0x50] sm:$0xff]
    %v167 = vld [vmem:[#allocation7 + $0x58] sm:$0xff]
    %v168 = vld [vmem:[#allocation7 + $0x60] sm:$0xff]
    %v169 = vld [vmem:[#allocation7 + $0x68] sm:$0xff]
    %v170 = vld [vmem:[#allocation7 + $0x70] sm:$0xff]
    %v171 = vld [vmem:[#allocation7 + $0x78] sm:$0xff]
    %v172 = vld [vmem:[#allocation7 + $0x80] sm:$0xff]
    %v173 = vld [vmem:[#allocation7 + $0x88] sm:$0xff]
    %v174 = vld [vmem:[#allocation7 + $0x90] sm:$0xff]
    %v175 = vld [vmem:[#allocation7 + $0x98] sm:$0xff]
    %v176 = vld [vmem:[#allocation7 + $0xa0] sm:$0xff]
    %v177 = vld [vmem:[#allocation7 + $0xa8] sm:$0xff]
    %v178 = vld [vmem:[#allocation7 + $0xb0] sm:$0xff]
    %v179 = vld [vmem:[#allocation7 + $0xb8] sm:$0xff]
    %v180 = vld [vmem:[#allocation7 + $0xc0] sm:$0xff]
    %v181 = vld [vmem:[#allocation7 + $0xc8] sm:$0xff]
    %v182 = vld [vmem:[#allocation7 + $0xd0] sm:$0xff]
    %v183 = vld [vmem:[#allocation7 + $0xd8] sm:$0xff]
    %v184 = vld [vmem:[#allocation7 + $0xe0] sm:$0xff]
    %v185 = vld [vmem:[#allocation7 + $0xe8] sm:$0xff]
    %v186 = vld [vmem:[#allocation7 + $0xf0] sm:$0xff]
    %v187 = vld [vmem:[#allocation7 + $0xf8] sm:$0xff]
    %v188 = vld [vmem:[#allocation7 + $0x100] sm:$0xff]
    %v189 = vld [vmem:[#allocation7 + $0x108] sm:$0xff]
    %v190 = vld [vmem:[#allocation7 + $0x110] sm:$0xff]
    %v191 = vld [vmem:[#allocation7 + $0x118] sm:$0xff]
    %v192 = vld [vmem:[#allocation7 + $0x120] sm:$0xff]
    %v193 = vld [vmem:[#allocation7 + $0x128] sm:$0xff]
    %v194 = vld [vmem:[#allocation7 + $0x130] sm:$0xff]
    %v195 = vld [vmem:[#allocation7 + $0x138] sm:$0xff]
    %v196 = vld [vmem:[#allocation7 + $0x140] sm:$0xff]
    %v197 = vld [vmem:[#allocation7 + $0x148] sm:$0xff]
    %v198 = vld [vmem:[#allocation7 + $0x150] sm:$0xff]
    %v199 = vld [vmem:[#allocation7 + $0x158] sm:$0xff]
    %v200 = vld [vmem:[#allocation7 + $0x160] sm:$0xff]
    %v201 = vld [vmem:[#allocation7 + $0x168] sm:$0xff]
    %v202 = vld [vmem:[#allocation7 + $0x170] sm:$0xff]
    %v203 = vld [vmem:[#allocation7 + $0x178] sm:$0xff]
    %v204 = vld [vmem:[#allocation7 + $0x180] sm:$0xff]
    %v205 = vld [vmem:[#allocation7 + $0x188] sm:$0xff]
    %v206 = vld [vmem:[#allocation7 + $0x190] sm:$0xff]
    %v207 = vld [vmem:[#allocation7 + $0x198] sm:$0xff]
    %v208 = vld [vmem:[#allocation7 + $0x1a0] sm:$0xff]
    %v209 = vld [vmem:[#allocation7 + $0x1a8] sm:$0xff]
    %v210 = vld [vmem:[#allocation7 + $0x1b0] sm:$0xff]
    %v211 = vld [vmem:[#allocation7 + $0x1b8] sm:$0xff]
    %v212 = vld [vmem:[#allocation7 + $0x1c0] sm:$0xff]
    %v213 = vld [vmem:[#allocation7 + $0x1c8] sm:$0xff]
    %v214 = vld [vmem:[#allocation7 + $0x1d0] sm:$0xff]
    %v215 = vld [vmem:[#allocation7 + $0x1d8] sm:$0xff]
    %v216 = vld [vmem:[#allocation7 + $0x1e0] sm:$0xff]
    %v217 = vld [vmem:[#allocation7 + $0x1e8] sm:$0xff]
    %v218 = vld [vmem:[#allocation7 + $0x1f0] sm:$0xff]
    %v219 = vld [vmem:[#allocation7 + $0x1f8] sm:$0xff]
    %v220 = vld [vmem:[#allocation7 + $0x200] sm:$0xff]
    %v221 = vld [vmem:[#allocation7 + $0x208] sm:$0xff]
    %v222 = vld [vmem:[#allocation7 + $0x210] sm:$0xff]
    %v223 = vld [vmem:[#allocation7 + $0x218] sm:$0xff]
    %v224 = vld [vmem:[#allocation7 + $0x220] sm:$0xff]
    %v225 = vld [vmem:[#allocation7 + $0x228] sm:$0xff]
    %v226 = vld [vmem:[#allocation7 + $0x230] sm:$0xff]
    %v227 = vld [vmem:[#allocation7 + $0x238] sm:$0xff]
    %v228 = vld [vmem:[#allocation7 + $0x240] sm:$0xff]
    %v229 = vld [vmem:[#allocation7 + $0x248] sm:$0xff]
    %v230 = vld [vmem:[#allocation7 + $0x250] sm:$0xff]
    %v231 = vld [vmem:[#allocation7 + $0x258] sm:$0xff]
    %v232 = vld [vmem:[#allocation7 + $0x260] sm:$0xff]
    %v233 = vld [vmem:[#allocation7 + $0x268] sm:$0xff]
    %v234 = vld [vmem:[#allocation7 + $0x270] sm:$0xff]
    %v235 = vld [vmem:[#allocation7 + $0x278] sm:$0xff]
    %v236 = vld [vmem:[#allocation7 + $0x280] sm:$0xff]
    %v237 = vld [vmem:[#allocation7 + $0x288] sm:$0xff]
    %v238 = vld [vmem:[#allocation7 + $0x290] sm:$0xff]
    %v239 = vld [vmem:[#allocation7 + $0x298] sm:$0xff]
    %v240 = vld [vmem:[#allocation7 + $0x2a0] sm:$0xff]
    %v241 = vld [vmem:[#allocation7 + $0x2a8] sm:$0xff]
    %v242 = vld [vmem:[#allocation7 + $0x2b0] sm:$0xff]
    %v243 = vld [vmem:[#allocation7 + $0x2b8] sm:$0xff]
    %v244 = vld [vmem:[#allocation7 + $0x2c0] sm:$0xff]
    %v245 = vld [vmem:[#allocation7 + $0x2c8] sm:$0xff]
    %v246 = vld [vmem:[#allocation7 + $0x2d0] sm:$0xff]
    %v247 = vld [vmem:[#allocation7 + $0x2d8] sm:$0xff]
    %v248 = vld [vmem:[#allocation7 + $0x2e0] sm:$0xff]
    %v249 = vld [vmem:[#allocation7 + $0x2e8] sm:$0xff]
    %v250 = vld [vmem:[#allocation7 + $0x2f0] sm:$0xff]
    %v251 = vld [vmem:[#allocation7 + $0x2f8] sm:$0xff]
    %v252 = vld [vmem:[#allocation7 + $0x300] sm:$0xff]
    %v253 = vld [vmem:[#allocation7 + $0x308] sm:$0xff]
    %v254 = vld [vmem:[#allocation7 + $0x310] sm:$0xff]
    %v255 = vld [vmem:[#allocation7 + $0x318] sm:$0xff]
    %v256 = vld [vmem:[#allocation7 + $0x320] sm:$0xff]
    %v257 = vld [vmem:[#allocation7 + $0x328] sm:$0xff]
    %v258 = vld [vmem:[#allocation7 + $0x330] sm:$0xff]
    %v259 = vld [vmem:[#allocation7 + $0x338] sm:$0xff]
    %v260 = vld [vmem:[#allocation7 + $0x340] sm:$0xff]
    %v261 = vld [vmem:[#allocation7 + $0x348] sm:$0xff]
    %v262 = vld [vmem:[#allocation7 + $0x350] sm:$0xff]
    %v263 = vld [vmem:[#allocation7 + $0x358] sm:$0xff]
    %v264 = vld [vmem:[#allocation7 + $0x360] sm:$0xff]
    %v265 = vld [vmem:[#allocation7 + $0x368] sm:$0xff]
    %v266 = vld [vmem:[#allocation7 + $0x370] sm:$0xff]
    %v267 = vld [vmem:[#allocation7 + $0x378] sm:$0xff]
    %v268 = vld [vmem:[#allocation7 + $0x380] sm:$0xff]
    %v269 = vld [vmem:[#allocation7 + $0x388] sm:$0xff]
    %v270 = vld [vmem:[#allocation7 + $0x390] sm:$0xff]
    %v271 = vld [vmem:[#allocation7 + $0x398] sm:$0xff]
    %v272 = vld [vmem:[#allocation7 + $0x3a0] sm:$0xff]
    %v273 = vld [vmem:[#allocation7 + $0x3a8] sm:$0xff]
    %v274 = vld [vmem:[#allocation7 + $0x3b0] sm:$0xff]
    %v275 = vld [vmem:[#allocation7 + $0x3b8] sm:$0xff]
    %v276 = vld [vmem:[#allocation7 + $0x3c0] sm:$0xff]
    %v277 = vld [vmem:[#allocation7 + $0x3c8] sm:$0xff]
    %v278 = vld [vmem:[#allocation7 + $0x3d0] sm:$0xff]
    %v279 = vld [vmem:[#allocation7 + $0x3d8] sm:$0xff]
    %v280 = vld [vmem:[#allocation7 + $0x3e0] sm:$0xff]
    %v281 = vld [vmem:[#allocation7 + $0x3e8] sm:$0xff]
    %v282 = vld [vmem:[#allocation7 + $0x3f0] sm:$0xff]
    %v283 = vld [vmem:[#allocation7 + $0x3f8] sm:$0xff]
    %v284 = vld [vmem:[#allocation7 + $0x400] sm:$0xff]
    %v285 = vld [vmem:[#allocation7 + $0x408] sm:$0xff]
    %v286 = vld [vmem:[#allocation7 + $0x410] sm:$0xff]
    %v287 = vld [vmem:[#allocation7 + $0x418] sm:$0xff]
    %v288 = vld [vmem:[#allocation7 + $0x420] sm:$0xff]
    %v289 = vld [vmem:[#allocation7 + $0x428] sm:$0xff]
    %v290 = vld [vmem:[#allocation7 + $0x430] sm:$0xff]
    %v291 = vld [vmem:[#allocation7 + $0x438] sm:$0xff]
    %v292 = vld [vmem:[#allocation7 + $0x440] sm:$0xff]
    %v293 = vld [vmem:[#allocation7 + $0x448] sm:$0xff]
    %v294 = vld [vmem:[#allocation7 + $0x450] sm:$0xff]
    %v295 = vld [vmem:[#allocation7 + $0x458] sm:$0xff]
    %v296 = vld [vmem:[#allocation7 + $0x460] sm:$0xff]
    %v297 = vld [vmem:[#allocation7 + $0x468] sm:$0xff]
    %v298 = vld [vmem:[#allocation7 + $0x470] sm:$0xff]
    %v299 = vld [vmem:[#allocation7 + $0x478] sm:$0xff]
    %300 = vmatprep.subr.mxu0 0.0
    %301 = vmatpush1.msra.mxu0 %v156
    %302 = vmatprep.subr.mxu0 0.0
    %303 = vmatpush1.msra.mxu0 %v157
    %304 = vmatprep.subr.mxu0 0.0
    %305 = vmatpush1.msra.mxu0 %v158
    %306 = vmatprep.subr.mxu0 0.0
    %307 = vmatpush1.msra.mxu0 %v159
    %308 = vmatprep.subr.mxu0 0.0
    %309 = vmatpush1.msra.mxu0 %v160
    %310 = vmatprep.subr.mxu0 0.0
    %311 = vmatpush1.msra.mxu0 %v161
    %312 = vmatprep.subr.mxu0 0.0
    %313 = vmatpush1.msra.mxu0 %v162
    %314 = vmatprep.subr.mxu0 0.0
    %315 = vmatpush1.msra.mxu0 %v163
    %316 = vmatprep.subr.mxu0 0.0
    %317 = vmatpush1.msra.mxu0 %v164
    %318 = vmatprep.subr.mxu0 0.0
    %319 = vmatpush1.msra.mxu0 %v165
    %320 = vmatprep.subr.mxu0 0.0
    %321 = vmatpush1.msra.mxu0 %v166
    %322 = vmatprep.subr.mxu0 0.0
    %323 = vmatpush1.msra.mxu0 %v167
    %324 = vmatprep.subr.mxu0 0.0
    %325 = vmatpush1.msra.mxu0 %v168
    %326 = vmatprep.subr.mxu0 0.0
    %327 = vmatpush1.msra.mxu0 %v169
    %328 = vmatprep.subr.mxu0 0.0
    %329 = vmatpush1.msra.mxu0 %v170
    %330 = vmatprep.subr.mxu0 0.0
    %331 = vmatpush1.msra.mxu0 %v171
    %332 = vmatprep.subr.mxu0 0.0
    %333 = vmatpush1.msra.mxu0 %v172
    %334 = vmatprep.subr.mxu0 0.0
    %335 = vmatpush1.msra.mxu0 %v173
    %336 = vmatprep.subr.mxu0 0.0
    %337 = vmatpush1.msra.mxu0 %v174
    %338 = vmatprep.subr.mxu0 0.0
    %339 = vmatpush1.msra.mxu0 %v175
    %340 = vmatprep.subr.mxu0 0.0
    %341 = vmatpush1.msra.mxu0 %v176
    %342 = vmatprep.subr.mxu0 0.0
    %343 = vmatpush1.msra.mxu0 %v177
    %344 = vmatprep.subr.mxu0 0.0
    %345 = vmatpush1.msra.mxu0 %v178
    %346 = vmatprep.subr.mxu0 0.0
    %347 = vmatpush1.msra.mxu0 %v179
    %348 = vmatprep.subr.mxu0 0.0
    %349 = vmatpush1.msra.mxu0 %v180
    %350 = vmatprep.subr.mxu0 0.0
    %351 = vmatpush1.msra.mxu0 %v181
    %352 = vmatprep.subr.mxu0 0.0
    %353 = vmatpush1.msra.mxu0 %v182
    %354 = vmatprep.subr.mxu0 0.0
    %355 = vmatpush1.msra.mxu0 %v183
    %356 = vmatprep.subr.mxu0 0.0
    %357 = vmatpush1.msra.mxu0 %v184
    %358 = vmatprep.subr.mxu0 0.0
    %359 = vmatpush1.msra.mxu0 %v185
    %360 = vmatprep.subr.mxu0 0.0
    %361 = vmatpush1.msra.mxu0 %v186
    %362 = vmatprep.subr.mxu0 0.0
    %363 = vmatpush1.msra.mxu0 %v187
    %364 = vmatprep.mubr.f32.mxu0 %v148
    %365 = vmatmul.mubr.f32.gmra.mrb[0].mxu0 %v147
    %v366 = vpop.f32.mrb[0].mxu0
    %v367 = vadd.f32 0.0, %v366
    %v368 = vpop.f32.mrb[0].mxu0
    %369 = vdwg.mxu0
    %370 = vmatprep.subr.mxu0 0.0
    %371 = vmatpush1.msra.mxu0 %v188
    %372 = vmatprep.subr.mxu0 0.0
    %373 = vmatpush1.msra.mxu0 %v189
    %374 = vmatprep.subr.mxu0 0.0
    %375 = vmatpush1.msra.mxu0 %v190
    %376 = vmatprep.subr.mxu0 0.0
    %377 = vmatpush1.msra.mxu0 %v191
    %378 = vmatprep.subr.mxu0 0.0
    %379 = vmatpush1.msra.mxu0 %v192
    %380 = vmatprep.subr.mxu0 0.0
    %381 = vmatpush1.msra.mxu0 %v193
    %382 = vmatprep.subr.mxu0 0.0
    %383 = vmatpush1.msra.mxu0 %v194
    %384 = vmatprep.subr.mxu0 0.0
    %385 = vmatpush1.msra.mxu0 %v195
    %386 = vmatprep.subr.mxu0 0.0
    %387 = vmatpush1.msra.mxu0 %v196
    %388 = vmatprep.subr.mxu0 0.0
    %389 = vmatpush1.msra.mxu0 %v197
    %390 = vmatprep.subr.mxu0 0.0
    %391 = vmatpush1.msra.mxu0 %v198
    %392 = vmatprep.subr.mxu0 0.0
    %393 = vmatpush1.msra.mxu0 %v199
    %394 = vmatprep.subr.mxu0 0.0
    %395 = vmatpush1.msra.mxu0 %v200
    %396 = vmatprep.subr.mxu0 0.0
    %397 = vmatpush1.msra.mxu0 %v201
    %398 = vmatprep.subr.mxu0 0.0
    %399 = vmatpush1.msra.mxu0 %v202
    %400 = vmatprep.subr.mxu0 0.0
    %401 = vmatpush1.msra.mxu0 %v203
    %402 = vmatprep.subr.mxu0 0.0
    %403 = vmatpush1.msra.mxu0 %v204
    %404 = vmatprep.subr.mxu0 0.0
    %405 = vmatpush1.msra.mxu0 %v205
    %406 = vmatprep.subr.mxu0 0.0
    %407 = vmatpush1.msra.mxu0 %v206
    %408 = vmatprep.subr.mxu0 0.0
    %409 = vmatpush1.msra.mxu0 %v207
    %410 = vmatprep.subr.mxu0 0.0
    %411 = vmatpush1.msra.mxu0 %v208
    %412 = vmatprep.subr.mxu0 0.0
    %413 = vmatpush1.msra.mxu0 %v209
    %414 = vmatprep.subr.mxu0 0.0
    %415 = vmatpush1.msra.mxu0 %v210
    %416 = vmatprep.subr.mxu0 0.0
    %417 = vmatpush1.msra.mxu0 %v211
    %418 = vmatprep.subr.mxu0 0.0
    %419 = vmatpush1.msra.mxu0 %v212
    %420 = vmatprep.subr.mxu0 0.0
    %421 = vmatpush1.msra.mxu0 %v213
    %422 = vmatprep.subr.mxu0 0.0
    %423 = vmatpush1.msra.mxu0 %v214
    %424 = vmatprep.subr.mxu0 0.0
    %425 = vmatpush1.msra.mxu0 %v215
    %426 = vmatprep.subr.mxu0 0.0
    %427 = vmatpush1.msra.mxu0 %v216
    %428 = vmatprep.subr.mxu0 0.0
    %429 = vmatpush1.msra.mxu0 %v217
    %430 = vmatprep.subr.mxu0 0.0
    %431 = vmatpush1.msra.mxu0 %v218
    %432 = vmatprep.subr.mxu0 0.0
    %433 = vmatpush1.msra.mxu0 %v219
    %434 = vmatprep.mubr.f32.mxu0 %v150
    %435 = vmatmul.mubr.f32.gmra.mrb[0].mxu0 %v149
    %v436 = vpop.f32.mrb[0].mxu0
    %v437 = vadd.f32 %v367, %v436
    %v438 = vpop.f32.mrb[0].mxu0
    %439 = vdwg.mxu0
    %440 = vmatprep.subr.mxu0 0.0
    %441 = vmatpush1.msra.mxu0 %v220
    %442 = vmatprep.subr.mxu0 0.0
    %443 = vmatpush1.msra.mxu0 %v221
    %444 = vmatprep.subr.mxu0 0.0
    %445 = vmatpush1.msra.mxu0 %v222
    %446 = vmatprep.subr.mxu0 0.0
    %447 = vmatpush1.msra.mxu0 %v223
    %448 = vmatprep.subr.mxu0 0.0
    %449 = vmatpush1.msra.mxu0 %v224
    %450 = vmatprep.subr.mxu0 0.0
    %451 = vmatpush1.msra.mxu0 %v225
    %452 = vmatprep.subr.mxu0 0.0
    %453 = vmatpush1.msra.mxu0 %v226
    %454 = vmatprep.subr.mxu0 0.0
    %455 = vmatpush1.msra.mxu0 %v227
    %456 = vmatprep.subr.mxu0 0.0
    %457 = vmatpush1.msra.mxu0 %v228
    %458 = vmatprep.subr.mxu0 0.0
    %459 = vmatpush1.msra.mxu0 %v229
    %460 = vmatprep.subr.mxu0 0.0
    %461 = vmatpush1.msra.mxu0 %v230
    %462 = vmatprep.subr.mxu0 0.0
    %463 = vmatpush1.msra.mxu0 %v231
    %464 = vmatprep.subr.mxu0 0.0
    %465 = vmatpush1.msra.mxu0 %v232
    %466 = vmatprep.subr.mxu0 0.0
    %467 = vmatpush1.msra.mxu0 %v233
    %468 = vmatprep.subr.mxu0 0.0
    %469 = vmatpush1.msra.mxu0 %v234
    %470 = vmatprep.subr.mxu0 0.0
    %471 = vmatpush1.msra.mxu0 %v235
    %472 = vmatprep.subr.mxu0 0.0
    %473 = vmatpush1.msra.mxu0 %v236
    %474 = vmatprep.subr.mxu0 0.0
    %475 = vmatpush1.msra.mxu0 %v237
    %476 = vmatprep.subr.mxu0 0.0
    %477 = vmatpush1.msra.mxu0 %v238
    %478 = vmatprep.subr.mxu0 0.0
    %479 = vmatpush1.msra.mxu0 %v239
    %480 = vmatprep.subr.mxu0 0.0
    %481 = vmatpush1.msra.mxu0 %v240
    %482 = vmatprep.subr.mxu0 0.0
    %483 = vmatpush1.msra.mxu0 %v241
    %484 = vmatprep.subr.mxu0 0.0
    %485 = vmatpush1.msra.mxu0 %v242
    %486 = vmatprep.subr.mxu0 0.0
    %487 = vmatpush1.msra.mxu0 %v243
    %488 = vmatprep.subr.mxu0 0.0
    %489 = vmatpush1.msra.mxu0 %v244
    %490 = vmatprep.subr.mxu0 0.0
    %491 = vmatpush1.msra.mxu0 %v245
    %492 = vmatprep.subr.mxu0 0.0
    %493 = vmatpush1.msra.mxu0 %v246
    %494 = vmatprep.subr.mxu0 0.0
    %495 = vmatpush1.msra.mxu0 %v247
    %496 = vmatprep.subr.mxu0 0.0
    %497 = vmatpush1.msra.mxu0 %v248
    %498 = vmatprep.subr.mxu0 0.0
    %499 = vmatpush1.msra.mxu0 %v249
    %500 = vmatprep.subr.mxu0 0.0
    %501 = vmatpush1.msra.mxu0 %v250
    %502 = vmatprep.subr.mxu0 0.0
    %503 = vmatpush1.msra.mxu0 %v251
    %504 = vmatprep.mubr.f32.mxu0 %v152
    %505 = vmatmul.mubr.f32.gmra.mrb[0].mxu0 %v151
    %v506 = vpop.f32.mrb[0].mxu0
    %v507 = vadd.f32 %v437, %v506
    %v508 = vpop.f32.mrb[0].mxu0
    %509 = vdwg.mxu0
    %510 = vmatprep.subr.mxu0 0.0
    %511 = vmatpush1.msra.mxu0 %v252
    %512 = vmatprep.subr.mxu0 0.0
    %513 = vmatpush1.msra.mxu0 %v253
    %514 = vmatprep.subr.mxu0 0.0
    %515 = vmatpush1.msra.mxu0 %v254
    %516 = vmatprep.subr.mxu0 0.0
    %517 = vmatpush1.msra.mxu0 %v255
    %518 = vmatprep.subr.mxu0 0.0
    %519 = vmatpush1.msra.mxu0 %v256
    %520 = vmatprep.subr.mxu0 0.0
    %521 = vmatpush1.msra.mxu0 %v257
    %522 = vmatprep.subr.mxu0 0.0
    %523 = vmatpush1.msra.mxu0 %v258
    %524 = vmatprep.subr.mxu0 0.0
    %525 = vmatpush1.msra.mxu0 %v259
    %526 = vmatprep.subr.mxu0 0.0
    %527 = vmatpush1.msra.mxu0 %v260
    %528 = vmatprep.subr.mxu0 0.0
    %529 = vmatpush1.msra.mxu0 %v261
    %530 = vmatprep.subr.mxu0 0.0
    %531 = vmatpush1.msra.mxu0 %v262
    %532 = vmatprep.subr.mxu0 0.0
    %533 = vmatpush1.msra.mxu0 %v263
    %534 = vmatprep.subr.mxu0 0.0
    %535 = vmatpush1.msra.mxu0 %v264
    %536 = vmatprep.subr.mxu0 0.0
    %537 = vmatpush1.msra.mxu0 %v265
    %538 = vmatprep.subr.mxu0 0.0
    %539 = vmatpush1.msra.mxu0 %v266
    %540 = vmatprep.subr.mxu0 0.0
    %541 = vmatpush1.msra.mxu0 %v267
    %542 = vmatprep.subr.mxu0 0.0
    %543 = vmatpush1.msra.mxu0 %v268
    %544 = vmatprep.subr.mxu0 0.0
    %545 = vmatpush1.msra.mxu0 %v269
    %546 = vmatprep.subr.mxu0 0.0
    %547 = vmatpush1.msra.mxu0 %v270
    %548 = vmatprep.subr.mxu0 0.0
    %549 = vmatpush1.msra.mxu0 %v271
    %550 = vmatprep.subr.mxu0 0.0
    %551 = vmatpush1.msra.mxu0 %v272
    %552 = vmatprep.subr.mxu0 0.0
    %553 = vmatpush1.msra.mxu0 %v273
    %554 = vmatprep.subr.mxu0 0.0
    %555 = vmatpush1.msra.mxu0 %v274
    %556 = vmatprep.subr.mxu0 0.0
    %557 = vmatpush1.msra.mxu0 %v275
    %558 = vmatprep.subr.mxu0 0.0
    %559 = vmatpush1.msra.mxu0 %v276
    %560 = vmatprep.subr.mxu0 0.0
    %561 = vmatpush1.msra.mxu0 %v277
    %562 = vmatprep.subr.mxu0 0.0
    %563 = vmatpush1.msra.mxu0 %v278
    %564 = vmatprep.subr.mxu0 0.0
    %565 = vmatpush1.msra.mxu0 %v279
    %566 = vmatprep.subr.mxu0 0.0
    %567 = vmatpush1.msra.mxu0 %v280
    %568 = vmatprep.subr.mxu0 0.0
    %569 = vmatpush1.msra.mxu0 %v281
    %570 = vmatprep.subr.mxu0 0.0
    %571 = vmatpush1.msra.mxu0 %v282
    %572 = vmatprep.subr.mxu0 0.0
    %573 = vmatpush1.msra.mxu0 %v283
    %574 = vmatprep.mubr.f32.mxu0 %v154
    %575 = vmatmul.mubr.f32.gmra.mrb[0].mxu0 %v153
    %v576 = vpop.f32.mrb[0].mxu0
    %v577 = vadd.f32 %v507, %v576
    %v578 = vpop.f32.mrb[0].mxu0
    %579 = vdwg.mxu0
    %580 = vmatprep.subr.mxu0 0.0
    %581 = vmatpush1.msra.mxu0 %v284
    %582 = vmatprep.subr.mxu0 0.0
    %583 = vmatpush1.msra.mxu0 %v285
    %584 = vmatprep.subr.mxu0 0.0
    %585 = vmatpush1.msra.mxu0 %v286
    %586 = vmatprep.subr.mxu0 0.0
    %587 = vmatpush1.msra.mxu0 %v287
    %588 = vmatprep.subr.mxu0 0.0
    %589 = vmatpush1.msra.mxu0 %v288
    %590 = vmatprep.subr.mxu0 0.0
    %591 = vmatpush1.msra.mxu0 %v289
    %592 = vmatprep.subr.mxu0 0.0
    %593 = vmatpush1.msra.mxu0 %v290
    %594 = vmatprep.subr.mxu0 0.0
    %595 = vmatpush1.msra.mxu0 %v291
    %596 = vmatprep.subr.mxu0 0.0
    %597 = vmatpush1.msra.mxu0 %v292
    %598 = vmatprep.subr.mxu0 0.0
    %599 = vmatpush1.msra.mxu0 %v293
    %600 = vmatprep.subr.mxu0 0.0
    %601 = vmatpush1.msra.mxu0 %v294
    %602 = vmatprep.subr.mxu0 0.0
    %603 = vmatpush1.msra.mxu0 %v295
    %604 = vmatprep.subr.mxu0 0.0
    %605 = vmatpush1.msra.mxu0 %v296
    %606 = vmatprep.subr.mxu0 0.0
    %607 = vmatpush1.msra.mxu0 %v297
    %608 = vmatprep.subr.mxu0 0.0
    %609 = vmatpush1.msra.mxu0 %v298
    %610 = vmatprep.subr.mxu0 0.0
    %611 = vmatpush1.msra.mxu0 %v299
    %612 = vmatprep.subr.mxu0 0.0
    %613 = vmatpush1.msra.mxu0 0.0
    %614 = vmatprep.subr.mxu0 0.0
    %615 = vmatpush1.msra.mxu0 0.0
    %616 = vmatprep.subr.mxu0 0.0
    %617 = vmatpush1.msra.mxu0 0.0
    %618 = vmatprep.subr.mxu0 0.0
    %619 = vmatpush1.msra.mxu0 0.0
    %620 = vmatprep.subr.mxu0 0.0
    %621 = vmatpush1.msra.mxu0 0.0
    %622 = vmatprep.subr.mxu0 0.0
    %623 = vmatpush1.msra.mxu0 0.0
    %624 = vmatprep.subr.mxu0 0.0
    %625 = vmatpush1.msra.mxu0 0.0
    %626 = vmatprep.subr.mxu0 0.0
    %627 = vmatpush1.msra.mxu0 0.0
    %628 = vmatprep.subr.mxu0 0.0
    %629 = vmatpush1.msra.mxu0 0.0
    %630 = vmatprep.subr.mxu0 0.0
    %631 = vmatpush1.msra.mxu0 0.0
    %632 = vmatprep.subr.mxu0 0.0
    %633 = vmatpush1.msra.mxu0 0.0
    %634 = vmatprep.subr.mxu0 0.0
    %635 = vmatpush1.msra.mxu0 0.0
    %636 = vmatprep.subr.mxu0 0.0
    %637 = vmatpush1.msra.mxu0 0.0
    %638 = vmatprep.subr.mxu0 0.0
    %639 = vmatpush1.msra.mxu0 0.0
    %640 = vmatprep.subr.mxu0 0.0
    %641 = vmatpush1.msra.mxu0 0.0
    %642 = vmatprep.subr.mxu0 0.0
    %643 = vmatpush1.msra.mxu0 0.0
    %644 = vmatprep.mubr.f32.mxu0 0.0
    %645 = vmatmul.mubr.f32.gmra.mrb[0].mxu0 %v155
    %v646 = vpop.f32.mrb[0].mxu0
    %v647 = vadd.f32 %v577, %v646
    %v648 = vpop.f32.mrb[0].mxu0
    %649 = vdwg.mxu0
    %v650 = vadd.f32 %v142, %v647
    %651 = vst [vmem:[#allocation3] sm:$0xff] %v650
    // Predicated region
    $region38: #{tpu_custom_call.1} parent=1 // pred_check
      %p652 = pneg %p48
    $region39: #{tpu_custom_call.1} parent=1 // pred_check_branch
      %654 = sbr.rel (%p652) target = $region41
    $region40: #{tpu_custom_call.1} parent=1 // pred_region
      %v655 = vld [vmem:[#allocation3] sm:$0xff]
      %v656 = vld [vmem:[%s4] sm:$0x1]
      %v658 = vlaneseq
      %v659 = vshrl.u32 %v658, 7
      %v660 = vsub.s32 0, %v659
      %v661 = vrot.slane %v656, %v660
      %v663 = vadd.f32 %v655, %v661
      %664 = vst [vmem:[#allocation9] sm:$0xff] %v663
    $region41: #{tpu_custom_call.1} parent=1 // pred_fallthru
      _
    // Predicated region
    $region42: #{tpu_custom_call.1} parent=1 // pred_check
      _
    $region43: #{tpu_custom_call.1} parent=1 // pred_check_branch
      %666 = sbr.rel (0) target = $region45
    $region44: #{tpu_custom_call.1} parent=1 // pred_region
      %s668 = ssub.s32 128, 128
      %669 = vsyncadd [#allocation6], %s668
      %s671 = sshll.u32 [#allocation9], 4
      %s672 = int_to_ptr.vmem [resolvable:$true] %s671
      %674 = dma.vmem_to_hbm [thread:$0]  %s672, 128, %s5, [#allocation6]
    $region45: #{tpu_custom_call.1} parent=1 // pred_fallthru
      _
    // Predicated region
    $region46: #{tpu_custom_call.1} parent=1 // pred_check
      _
    $region47: #{tpu_custom_call.1} parent=1 // pred_check_branch
      %676 = sbr.rel (0) target = $region49
    $region48: #{tpu_custom_call.1} parent=1 // pred_region
      %677 = dma.done [#allocation6], 128
    $region49: #{tpu_custom_call.1} parent=1 // pred_fallthru
      _
    %678 = vsyncpa [#allocation5], 1
    %679 = vsyncpa [#allocation8], 1
    %680 = vsyncpa [#allocation6], 1

</llo_original>
